<compile_context>
chip_gen: v6e
topology: v6e:2x2x1
jax: 0.10.0
libtpu: 0.0.40
codegen_flags: <defaults>
</compile_context>

<pallas_src>
import functools

import jax
import jax.numpy as jnp
from jax.experimental import pallas as pl
from jax.experimental.pallas import tpu as pltpu

_LANES = 128  # last block dim is always the full 128-lane width (unmasked vst)


def _sqsoftplus_kernel(x_ref, o_ref):
    # Upcast to f32: free for an HBM-bound op, keeps bf16/f16 inputs numerically
    # consistent across TPU generations (v5e has no bf16 VPU anyway).
    z = x_ref[...].astype(jnp.float32)
    # SqSoftplus — matches the PyTorch module exactly (including the `z +` term of the
    # middle branch):
    #   z                     , z >  0.5
    #   z + (z + 0.5)^2 / 2   , -0.5 <= z <= 0.5
    #   0                     , z < -0.5
    zp = z + 0.5
    mid = z + zp * zp * 0.5
    out = jnp.where(z > 0.5, z, jnp.where(z < -0.5, 0.0, mid))
    o_ref[...] = out.astype(o_ref.dtype)


def _sqsoftplus_jnp(z):
    """Plain-jnp path used only for the <=127-element unaligned tail."""
    zf = z.astype(jnp.float32)
    mid = zf + (zf + 0.5) ** 2 * 0.5
    return jnp.where(zf > 0.5, zf, jnp.where(zf < -0.5, 0.0, mid)).astype(z.dtype)


@functools.lru_cache(maxsize=None)
def _tpu_defaults():
    """(target_block_bytes, vmem_limit_bytes), picked per TPU generation.

    v7x (64 MiB physical VMEM, ~3.2 TB/s HBM): 8 MiB blocks amortize the ~0.35 us
    per-grid-step overhead; 2 arrays x 2 buffers x 8 MiB = 32 MiB -> scoped limit 40 MiB.
    v5e / v6e (128 MiB physical): 4 MiB blocks; explicit 32 MiB scoped limit clears both
    v6e's 32 MiB and v5e's 16 MiB scoped defaults, far under physical VMEM.
    """
    try:
        vmem_cap = pltpu.get_tpu_info().vmem_capacity_bytes
    except Exception:  # detection failure -> safe-everywhere default
        vmem_cap = None
    if vmem_cap is not None and vmem_cap <= (64 << 20):
        return 8 << 20, 40 << 20
    return 4 << 20, 32 << 20


def _pick_block_rows(rows, dtype, target_block_bytes):
    """Block height sized in bytes (dtype-aware) and legal for the (8,128) tiling."""
    itemsize = jnp.dtype(dtype).itemsize
    sub = 8 * max(1, 4 // itemsize)             # 8 (f32) / 16 (bf16,f16) / 32 (int8,fp8)
    budget = max(sub, target_block_bytes // (_LANES * itemsize))
    if rows > budget:                           # multi-step grid; ragged tail block masked
        return max(sub, (budget // sub) * sub)
    if rows >= 2 * sub:
        # Whole slab would fit one block: split into 2 grid steps so the "parallel" grid
        # axis can be sharded across v7x's 2 TensorCores (neutral on single-TC v5e/v6e).
        half = (rows + 1) // 2
        return ((half + sub - 1) // sub) * sub
    return rows                                 # tiny slab: single full-extent block


def _run_slab(x2d, block_rows, vmem_limit, inplace):
    rows, lanes = x2d.shape
    grid = (pl.cdiv(rows, block_rows),)
    # Aliasing only when explicitly requested (mirrors the PyTorch `inplace` flag);
    # on the default path no defensive copy of x is ever forced.
    extra = {"input_output_aliases": {0: 0}} if inplace else {}
    return pl.pallas_call(
        _sqsoftplus_kernel,
        out_shape=jax.ShapeDtypeStruct((rows, lanes), x2d.dtype),
        grid_spec=pltpu.PrefetchScalarGridSpec(
            num_scalar_prefetch=0,
            grid=grid,
            in_specs=[pl.BlockSpec((block_rows, lanes), lambda i: (i, 0))],
            out_specs=pl.BlockSpec((block_rows, lanes), lambda i: (i, 0)),
        ),
        compiler_params=pltpu.CompilerParams(
            dimension_semantics=("parallel",),   # v7x megacore shards grid steps
            vmem_limit_bytes=vmem_limit,
        ),
        **extra,
    )(x2d)


@functools.partial(jax.jit, static_argnames=("block_bytes", "inplace"))
def sqsoftplus(x: jax.Array, *, block_bytes=None, inplace: bool = False) -> jax.Array:
    """SqSoftplus elementwise via a Pallas TPU kernel (any shape, float dtype).

    block_bytes: per-grid-step block size in bytes (None -> per-generation default).
    inplace: only set True when the caller donates x (jax.jit donate_argnums); otherwise
             XLA would insert a defensive copy and slow this memory-bound op down.
    """
    orig_shape, dtype, n = x.shape, x.dtype, x.size
    if n == 0:
        return x

    auto_bytes, vmem_limit = _tpu_defaults()
    target_bytes = auto_bytes if block_bytes is None else int(block_bytes)

    flat = x.reshape(-1)                        # row-major reshape: bitcast, no copy
    rows = n // _LANES
    if rows == 0:
        # Fewer than 128 elements: no lane-aligned slab exists; plain jnp is cheaper
        # than a padded kernel launch.
        return _sqsoftplus_jnp(flat).reshape(orig_shape)

    block_rows = _pick_block_rows(rows, dtype, target_bytes)

    if n % _LANES == 0:
        # Hot path: no pad, no slice, no alias-forced copy — kernel HBM traffic only.
        out2d = _run_slab(flat.reshape(rows, _LANES), block_rows, vmem_limit, inplace)
        return out2d.reshape(orig_shape)

    # Unaligned: kernel on the 128-aligned prefix; <=127-element tail in plain jnp.
    head = flat[: rows * _LANES].reshape(rows, _LANES)
    head_out = _run_slab(head, block_rows, vmem_limit, inplace=False)
    tail_out = _sqsoftplus_jnp(flat[rows * _LANES:])
    return jnp.concatenate([head_out.reshape(-1), tail_out]).reshape(orig_shape)


def _sqsoftplus_ref(z):
    zf = z.astype(jnp.float32)
    mid = zf + (zf + 0.5) ** 2 / 2.0
    return jnp.where(zf > 0.5, zf,
                     jnp.where(zf < -0.5, jnp.zeros_like(zf), mid)).astype(z.dtype)


if __name__ == "__main__":
    # Primary: NCHW input matching the PyTorch module's typical use
    # (lane-aligned zero-copy path; 2-step "parallel" grid).
    x = jax.random.normal(jax.random.PRNGKey(0), (2, 4, 16, 16), dtype=jnp.float32)
    out = sqsoftplus(x)
    jax.block_until_ready(out)
    assert out.shape == x.shape and out.dtype == x.dtype
    assert jnp.allclose(out, _sqsoftplus_ref(x), atol=1e-6, rtol=1e-6)

    # Unaligned element count < 128 (pure-tail path).
    x2 = jax.random.normal(jax.random.PRNGKey(1), (3, 5, 7), dtype=jnp.float32)
    out2 = sqsoftplus(x2)
    jax.block_until_ready(out2)
    assert jnp.allclose(out2, _sqsoftplus_ref(x2), atol=1e-6, rtol=1e-6)

    # Unaligned with a non-empty aligned prefix (prefix kernel + jnp tail, no pad pass).
    x3 = jax.random.normal(jax.random.PRNGKey(2), (5, 130), dtype=jnp.float32)
    out3 = sqsoftplus(x3)
    jax.block_until_ready(out3)
    assert jnp.allclose(out3, _sqsoftplus_ref(x3), atol=1e-6, rtol=1e-6)

    # Multi-step grid with a ragged (masked) final block via a small explicit block size.
    x4 = jax.random.normal(jax.random.PRNGKey(3), (4, 4, 40, 40), dtype=jnp.float32)
    out4 = sqsoftplus(x4, block_bytes=64 * 128 * 4)
    jax.block_until_ready(out4)
    assert jnp.allclose(out4, _sqsoftplus_ref(x4), atol=1e-6, rtol=1e-6)

    # bf16 input: dtype-aware sublane multiple (16) and in-kernel f32 compute.
    x5 = jax.random.normal(jax.random.PRNGKey(4), (2, 4, 16, 16), dtype=jnp.bfloat16)
    out5 = sqsoftplus(x5)
    jax.block_until_ready(out5)
    assert out5.dtype == jnp.bfloat16
    assert jnp.allclose(out5.astype(jnp.float32),
                        _sqsoftplus_ref(x5).astype(jnp.float32), atol=5e-2, rtol=5e-2)

    print("KERNEL_OK")
</pallas_src>

<mosaic_0001>
module attributes {stable_mosaic.version = 11 : i64} {
  func.func @_sqsoftplus_kernel(%arg0: i32, %arg1: memref<8x128xf32, #tpu.memory_space<vmem>>, %arg2: memref<8x128xf32, #tpu.memory_space<vmem>>) attributes {dimension_semantics = [#tpu.dimension_semantics<parallel>], iteration_bounds = array<i64: 2>, scalar_prefetch = 0 : i64, scratch_operands = 0 : i64, tpu.core_type = #tpu.core_type<tc>, window_params = [{transform_indices = @transform_0, window_bounds = array<i64: 8, 128>}, {transform_indices = @transform_1, window_bounds = array<i64: 8, 128>}]} {
    %c0 = arith.constant 0 : index
    %c0_0 = arith.constant 0 : index
    %0 = vector.load %arg1[%c0, %c0_0] : memref<8x128xf32, #tpu.memory_space<vmem>>, vector<8x128xf32>
    %cst = arith.constant 5.000000e-01 : f32
    %1 = vector.broadcast %cst : f32 to vector<8x128xf32>
    %2 = arith.addf %0, %1 : vector<8x128xf32>
    %3 = arith.mulf %2, %2 : vector<8x128xf32>
    %cst_1 = arith.constant 5.000000e-01 : f32
    %4 = vector.broadcast %cst_1 : f32 to vector<8x128xf32>
    %5 = arith.mulf %3, %4 : vector<8x128xf32>
    %6 = arith.addf %0, %5 : vector<8x128xf32>
    %cst_2 = arith.constant 5.000000e-01 : f32
    %7 = vector.broadcast %cst_2 : f32 to vector<8x128xf32>
    %8 = arith.cmpf ogt, %0, %7 : vector<8x128xf32>
    %cst_3 = arith.constant -5.000000e-01 : f32
    %9 = vector.broadcast %cst_3 : f32 to vector<8x128xf32>
    %10 = arith.cmpf olt, %0, %9 : vector<8x128xf32>
    %cst_4 = arith.constant 0.000000e+00 : f32
    %11 = vector.broadcast %cst_4 : f32 to vector<8x128xf32>
    %12 = arith.select %10, %11, %6 : vector<8x128xi1>, vector<8x128xf32>
    %13 = arith.select %8, %0, %12 : vector<8x128xi1>, vector<8x128xf32>
    %c0_5 = arith.constant 0 : index
    %c0_6 = arith.constant 0 : index
    %14 = vector.load %arg2[%c0_5, %c0_6] : memref<8x128xf32, #tpu.memory_space<vmem>>, vector<8x128xf32>
    tpu.vector_store %arg2[%c0_5, %c0_6], %13 {strides = array<i32>} : memref<8x128xf32, #tpu.memory_space<vmem>>, vector<8x128xf32>,
    return
  }
  func.func @transform_0(%arg0: i32) -> (i32, i32) {
    %c0_i32 = arith.constant 0 : i32
    %c0_i32_0 = arith.constant 0 : i32
    return %arg0, %c0_i32 : i32, i32
  }
  func.func @transform_1(%arg0: i32) -> (i32, i32) {
    %c0_i32 = arith.constant 0 : i32
    %c0_i32_0 = arith.constant 0 : i32
    return %arg0, %c0_i32 : i32, i32
  }
}

</mosaic_0001>

<llo_original>
// kernel: sqsoftplus.1
$region0: #{sqsoftplus.1}
  #allocation0 [shape = 'u32[]', space=smem, size = 0x4, offset = 0x4, fixed_abs, tag = 'smem constant byte address 0x4 - core index']
  #allocation1 [shape = 'u32[144,128]{1,0:T(1,128)}', space=vmem, size = 0x12000, scoped, tag = 'internal scratch']
  %s0 = inlined_call_operand.vmem [shape: f32[16,128], index: 0, kind: input, shape index: {}]
  %s1 = inlined_call_operand.vmem [shape: f32[16,128], index: 1, kind: output, shape index: {}]
  %s2 = sld [smem:[#allocation0]]
  $region37: #{sqsoftplus.1} parent=0
    _
  %s4 = ssub.s32 1, %s2
  %s5 = scalar_select 0, %s4, %s2
  loop: start=0, step=1, limit=4
  $region2: #{sqsoftplus.1} parent=0 // loop_pre_header
    _
  $region3: #{sqsoftplus.1} parent=0 // loop_header
    %s7 = sphi 0, %s11
    %p8 = scmp.ge.s32.totalorder %s7, 4
    %s17 = sphi 0, %s19
    %s20 = sphi 0, %s17
    %s21 = sphi 0, %s20
    %s37 = sphi 0, %s21
    %s43 = sphi 0, %s45
    %s46 = sphi 0, %s43
    %s47 = sphi 0, %s46
    %s63 = sphi 0, %s47
  $region4: #{sqsoftplus.1} parent=0 // loop_header_branch
    %10 = sbr.rel (%p8) target = $region8
  $region5: #{sqsoftplus.1} parent=0 // loop_body
    %s12 = ssub.s32 %s7, 1
    %s13 = ssub.s32 %s7, 2
    %s14 = sadd.s32 %s7, 1
    %s15 = ssub.s32 %s7, %s14
    %p16 = scmp.eq.s32.totalorder %s15, 0
    %s18 = sadd.s32 %s17, 1
    %s19 = scalar_select %p16, %s17, %s18
    %p22 = pneg %p16
    %p23 = scmp.eq.s32.totalorder %s7, 1
    %p24 = por %p22, %p23
    %p25 = scmp.ne.s32.totalorder %s17, %s20
    %p26 = scmp.eq.s32.totalorder %s7, 0
    %p27 = por %p25, %p26
    %p28 = scmp.ne.s32.totalorder %s17, %s20
    %p29 = scmp.eq.s32.totalorder %s12, 1
    %p30 = por %p28, %p29
    %p31 = scmp.ne.s32.totalorder %s20, %s21
    %p32 = scmp.eq.s32.totalorder %s12, 0
    %p33 = por %p31, %p32
    %p34 = scmp.ne.s32.totalorder %s20, %s21
    %p35 = scmp.eq.s32.totalorder %s13, 1
    %p36 = por %p34, %p35
    %p38 = scmp.ne.s32.totalorder %s21, %s37
    %p39 = scmp.eq.s32.totalorder %s13, 0
    %p40 = por %p38, %p39
    %s41 = ssub.s32 %s7, %s14
    %p42 = scmp.eq.s32.totalorder %s41, 0
    %s44 = sadd.s32 %s43, 1
    %s45 = scalar_select %p42, %s43, %s44
    %p48 = pneg %p42
    %p49 = scmp.eq.s32.totalorder %s7, 1
    %p50 = por %p48, %p49
    %p51 = scmp.ne.s32.totalorder %s43, %s46
    %p52 = scmp.eq.s32.totalorder %s7, 0
    %p53 = por %p51, %p52
    %p54 = scmp.ne.s32.totalorder %s43, %s46
    %p55 = scmp.eq.s32.totalorder %s12, 1
    %p56 = por %p54, %p55
    %p57 = scmp.ne.s32.totalorder %s46, %s47
    %p58 = scmp.eq.s32.totalorder %s12, 0
    %p59 = por %p57, %p58
    %p60 = scmp.ne.s32.totalorder %s46, %s47
    %p61 = scmp.eq.s32.totalorder %s13, 1
    %p62 = por %p60, %p61
    %p64 = scmp.ne.s32.totalorder %s47, %s63
    %p65 = scmp.eq.s32.totalorder %s13, 0
    %p66 = por %p64, %p65
    %p67 = scmp.le.s32.totalorder 1, %s7
    %p68 = scmp.lt.s32.totalorder %s7, 3
    %p69 = pnand %p67, %p68
    %p70 = pneg %p69
    // Predicated region
    $region9: #{sqsoftplus.1} parent=5 // pred_check
      _
    $region10: #{sqsoftplus.1} parent=5 // pred_check_branch
      %72 = sbr.rel (%p69) target = $region12
    $region11: #{sqsoftplus.1} parent=5 // pred_region
      %s73 = ssub.s32 %s7, 1
    $region12: #{sqsoftplus.1} parent=5 // pred_fallthru
      _
    %p74 = scmp.lt.s32.totalorder %s7, 2
    // Predicated region
    $region13: #{sqsoftplus.1} parent=5 // pred_check
      %p75 = pneg %p74
    $region14: #{sqsoftplus.1} parent=5 // pred_check_branch
      %77 = sbr.rel (%p75) target = $region16
    $region15: #{sqsoftplus.1} parent=5 // pred_region
      // Predicated region
      $region17: #{sqsoftplus.1} parent=15 // pred_check
        %p78 = pneg %p27
      $region18: #{sqsoftplus.1} parent=15 // pred_check_branch
        %80 = sbr.rel (%p78) target = $region20
      $region19: #{sqsoftplus.1} parent=15 // pred_region
        %p81 = scmp.lt.s32.totalorder %s7, 1
        %s82 = scalar_select %p81, %s7, 1
        %s83 = smul.addr %s82, 8
        %s84 = scalar_lea.vmem %s0, %s83
      $region20: #{sqsoftplus.1} parent=15 // pred_fallthru
        _
    $region16: #{sqsoftplus.1} parent=5 // pred_fallthru
      _
    %p85 = scmp.le.s32.totalorder 1, %s7
    %p86 = scmp.lt.s32.totalorder %s7, 3
    %p87 = pnand %p85, %p86
    %p88 = pneg %p87
    // Predicated region
    $region21: #{sqsoftplus.1} parent=5 // pred_check
      _
    $region22: #{sqsoftplus.1} parent=5 // pred_check_branch
      %90 = sbr.rel (%p87) target = $region24
    $region23: #{sqsoftplus.1} parent=5 // pred_region
      %s91 = ssub.s32 %s7, 1
      %p92 = scmp.lt.s32.totalorder %s12, 1
      %s93 = scalar_select %p92, %s12, 1
      %s94 = smul.addr %s93, 8
      %s95 = scalar_lea.vmem %s0, %s94
      %p96 = pneg %p33
      %p97 = pneg %p30
      %p98 = pneg %p59
      %p99 = pneg %p56
      %p100 = scmp.lt.s32.totalorder %s12, 1
      %s101 = scalar_select %p100, %s12, 1
      %s102 = smul.addr %s101, 8
      %s103 = scalar_lea.vmem %s1, %s102
      %p104 = scmp.lt.s32.totalorder %s12, 1
      %s105 = scalar_select %p104, %s12, 1
      %s106 = smul.addr %s105, 8
      %s107 = scalar_lea.vmem %s0, %s106
      %p108 = scmp.lt.s32.totalorder %s12, 1
      %s109 = scalar_select %p108, %s12, 1
      %s110 = smul.addr %s109, 8
      %s111 = scalar_lea.vmem %s1, %s110
      %v112 = vld [vmem:[%s107] sm:$0xff]
      %v113 = vadd.f32 %v112, 0.5
      %v114 = vmul.f32 %v113, %v113
      %v115 = vmul.f32 %v114, 0.5
      %v116 = vadd.f32 %v112, %v115
      %vm117 = vcmp.gt.f32.partialorder %v112, 0.5
      %vm118 = vcmp.lt.f32.partialorder %v112, -0.5
      %v119 = vsel %vm118, 0.0, %v116
      %v120 = vsel %vm117, %v112, %v119
      %121 = vst [vmem:[%s111] sm:$0xff] %v120
      %p122 = scmp.lt.s32.totalorder %s12, 1
      %s123 = scalar_select %p122, %s12, 1
      %s124 = smul.addr %s123, 8
      %s125 = scalar_lea.vmem %s1, %s124
      // Predicated region
      $region25: #{sqsoftplus.1} parent=23 // pred_check
        %p126 = pneg %p56
      $region26: #{sqsoftplus.1} parent=23 // pred_check_branch
        %128 = sbr.rel (%p126) target = $region28
      $region27: #{sqsoftplus.1} parent=23 // pred_region
        _
      $region28: #{sqsoftplus.1} parent=23 // pred_fallthru
        _
    $region24: #{sqsoftplus.1} parent=5 // pred_fallthru
      _
    %p129 = scmp.le.s32.totalorder 2, %s7
    // Predicated region
    $region29: #{sqsoftplus.1} parent=5 // pred_check
      %p130 = pneg %p129
    $region30: #{sqsoftplus.1} parent=5 // pred_check_branch
      %132 = sbr.rel (%p130) target = $region32
    $region31: #{sqsoftplus.1} parent=5 // pred_region
      %s133 = ssub.s32 %s7, 2
      // Predicated region
      $region33: #{sqsoftplus.1} parent=31 // pred_check
        %p134 = pneg %p62
      $region34: #{sqsoftplus.1} parent=31 // pred_check_branch
        %136 = sbr.rel (%p134) target = $region36
      $region35: #{sqsoftplus.1} parent=31 // pred_region
        %p137 = scmp.lt.s32.totalorder %s13, 1
        %s138 = scalar_select %p137, %s13, 1
        %s139 = smul.addr %s138, 8
        %s140 = scalar_lea.vmem %s1, %s139
      $region36: #{sqsoftplus.1} parent=31 // pred_fallthru
        _
    $region32: #{sqsoftplus.1} parent=5 // pred_fallthru
      _
  $region6: #{sqsoftplus.1} parent=0 // loop_footer
    %s11 = sadd.s32 1, %s7
  $region7: #{sqsoftplus.1} parent=0 // loop_footer_branch
    %6 = sbr.rel target = $region3
  $region8: #{sqsoftplus.1} parent=0 // loop_exit
    _

</llo_original>
